<compile_context>
chip_gen: v6e
topology: v6e:2x2x1
jax: 0.10.0
libtpu: 0.0.40
codegen_flags: <defaults>
</compile_context>

<pallas_src>
import functools

import numpy as np
import jax
import jax.numpy as jnp
from jax.experimental import pallas as pl
from jax.experimental.pallas import tpu as pltpu


# ----------------------------------------------------------------------------
# Kernel 1: stacked Chebyshev supports, emitted as one (K*N, N) matrix so the
# per-step propagation is a single wide matmul.
# ----------------------------------------------------------------------------
def supports_kernel(emb_ref, out_ref, *, cheb_k):
    E = emb_ref[...]                                             # (N, D)
    N = E.shape[0]
    A = jax.lax.dot_general(E, E, (((1,), (1,)), ((), ())),
                            preferred_element_type=jnp.float32)  # (N, N)
    A = jnp.maximum(A, 0.0)
    A = A - jnp.max(A, axis=1, keepdims=True)
    expA = jnp.exp(A)
    S = expA / jnp.sum(expA, axis=1, keepdims=True)
    row = jax.lax.broadcasted_iota(jnp.int32, (N, N), 0)
    col = jax.lax.broadcasted_iota(jnp.int32, (N, N), 1)
    eye = jnp.where(row == col, 1.0, 0.0).astype(jnp.float32)
    sup = [eye, S]
    for _ in range(2, cheb_k):
        sup.append(2.0 * jnp.dot(S, sup[-1], preferred_element_type=jnp.float32)
                   - sup[-2])
    for k in range(cheb_k):
        out_ref[k * N:(k + 1) * N, :] = sup[k]


def compute_supports(node_embeddings, cheb_k):
    N, D = node_embeddings.shape
    return pl.pallas_call(
        functools.partial(supports_kernel, cheb_k=cheb_k),
        out_shape=jax.ShapeDtypeStruct((cheb_k * N, N), jnp.float32),
        in_specs=[pl.BlockSpec((N, D), lambda: (0, 0))],
        out_specs=pl.BlockSpec((cheb_k * N, N), lambda: (0, 0)),
    )(node_embeddings)


# ----------------------------------------------------------------------------
# Kernel 2: one fused AGCRN layer.  grid = (B, T), T innermost ("arbitrary"),
# hidden state carried in a VMEM scratch, weights VMEM-resident.
# ----------------------------------------------------------------------------
def layer_kernel(x_ref, init_ref, sup_ref, emb_ref,
                 gpx_ref, gps_ref, gbp_ref,
                 upx_ref, ups_ref, ubp_ref,
                 out_ref, state_ref):
    t = pl.program_id(1)

    @pl.when(t == 0)
    def _():
        state_ref[...] = init_ref[...]

    x_t = x_ref[...]                      # (N, Din)
    st = state_ref[...]                   # (N, H)
    sup = sup_ref[...]                    # (K*N, N)
    emb = emb_ref[...]                    # (N, E)

    N = sup.shape[1]
    K = sup.shape[0] // N
    E = emb.shape[1]
    H = st.shape[1]

    def pool_contract(prop_x, prop_s, px_ref, ps_ref, bp_ref, odim):
        # prop_x: (K*N, Din), prop_s: (K*N, H)
        # px_ref: (K, Din, E*odim), ps_ref: (K, H, E*odim), bp_ref: (E, odim)
        t1 = jnp.dot(prop_x[0:N, :], px_ref[0],
                     preferred_element_type=jnp.float32)          # (N, E*odim)
        t1 = t1 + jnp.dot(prop_s[0:N, :], ps_ref[0],
                          preferred_element_type=jnp.float32)
        for k in range(1, K):
            sl = slice(k * N, (k + 1) * N)
            t1 = t1 + jnp.dot(prop_x[sl, :], px_ref[k],
                              preferred_element_type=jnp.float32)
            t1 = t1 + jnp.dot(prop_s[sl, :], ps_ref[k],
                              preferred_element_type=jnp.float32)
        # bias mix + rank-E weighted reduction over the embedding dim.
        acc = jnp.dot(emb, bp_ref[...], preferred_element_type=jnp.float32)
        for e in range(E):
            acc = acc + emb[:, e:e + 1] * t1[:, e * odim:(e + 1) * odim]
        return acc                                                # (N, odim)

    # Graph propagation for all K Chebyshev orders in one matmul each.
    prop_x = jnp.dot(sup, x_t, preferred_element_type=jnp.float32)    # (K*N, Din)
    prop_s = jnp.dot(sup, st, preferred_element_type=jnp.float32)     # (K*N, H)

    # Gate: single conv with 2H-wide output, slice z / r in-register.
    zr = jax.nn.sigmoid(pool_contract(prop_x, prop_s,
                                      gpx_ref, gps_ref, gbp_ref, 2 * H))
    z = zr[:, :H]
    r = zr[:, H:]

    # Candidate: reuse prop_x; only z*state needs a fresh propagation.
    prop_c = jnp.dot(sup, z * st, preferred_element_type=jnp.float32)  # (K*N, H)
    hc = jnp.tanh(pool_contract(prop_x, prop_c,
                                upx_ref, ups_ref, ubp_ref, H))          # (N, H)

    h = r * st + (1.0 - r) * hc
    state_ref[...] = h
    out_ref[...] = h


def run_layer(x_seq, h0, sup_flat, emb, gpx, gps, gbp, upx, ups, ubp):
    B, T, N, Din = x_seq.shape
    H = h0.shape[-1]
    E = emb.shape[1]
    KN = sup_flat.shape[0]
    cheb_k = gpx.shape[0]

    const2 = lambda b, t: (0, 0)
    const3 = lambda b, t: (0, 0, 0)

    return pl.pallas_call(
        layer_kernel,
        out_shape=jax.ShapeDtypeStruct((B, T, N, H), jnp.float32),
        grid=(B, T),
        in_specs=[
            pl.BlockSpec((None, None, N, Din), lambda b, t: (b, t, 0, 0)),  # x[:, t]
            pl.BlockSpec((None, N, H), lambda b, t: (b, 0, 0)),             # init state
            pl.BlockSpec((KN, N), const2),                                  # supports
            pl.BlockSpec((N, E), const2),                                   # node embeddings
            pl.BlockSpec((cheb_k, Din, E * 2 * H), const3),                 # gate pool (x part)
            pl.BlockSpec((cheb_k, H, E * 2 * H), const3),                   # gate pool (h part)
            pl.BlockSpec((E, 2 * H), const2),                               # gate bias pool
            pl.BlockSpec((cheb_k, Din, E * H), const3),                     # update pool (x part)
            pl.BlockSpec((cheb_k, H, E * H), const3),                       # update pool (h part)
            pl.BlockSpec((E, H), const2),                                   # update bias pool
        ],
        out_specs=pl.BlockSpec((None, None, N, H), lambda b, t: (b, t, 0, 0)),
        scratch_shapes=[pltpu.VMEM((N, H), jnp.float32)],
        compiler_params=pltpu.CompilerParams(
            dimension_semantics=("parallel", "arbitrary")),
    )(x_seq, h0, sup_flat, emb, gpx, gps, gbp, upx, ups, ubp)


# ----------------------------------------------------------------------------
# Kernel 3: end_conv head.  Conv2d(1, P, kernel=(1, H)) on (B,1,N,H) is a
# per-node linear map: one (N, H) @ (H, P) matmul per batch element.
# ----------------------------------------------------------------------------
def end_conv_kernel(h_ref, w_ref, b_ref, out_ref):
    out_ref[...] = (jnp.dot(h_ref[...], w_ref[...],
                            preferred_element_type=jnp.float32) + b_ref[...])


def end_head(last, w2, b2):
    B, N, H = last.shape
    P = w2.shape[1]
    return pl.pallas_call(
        end_conv_kernel,
        out_shape=jax.ShapeDtypeStruct((B, N, P), jnp.float32),
        grid=(B,),
        in_specs=[
            pl.BlockSpec((None, N, H), lambda b: (b, 0, 0)),
            pl.BlockSpec((H, P), lambda b: (0, 0)),
            pl.BlockSpec((1, P), lambda b: (0, 0)),
        ],
        out_specs=pl.BlockSpec((None, N, P), lambda b: (b, 0, 0)),
        compiler_params=pltpu.CompilerParams(
            dimension_semantics=("parallel",)),
    )(last, w2, b2)


# ----------------------------------------------------------------------------
# Wrappers (parameter layout prep + layer/time glue)
# ----------------------------------------------------------------------------
def avwdcrnn_forward(x, init_state, node_embeddings, params, cheb_k):
    """Pallas implementation of AVWDCRNN.forward.

    x: (B, T, N, Din), init_state: (L, B, N, H)
    returns (current_inputs (B, T, N, H), [h_layer_i (B, N, H), ...])
    """
    B, T, N, _ = x.shape
    H = init_state.shape[-1]
    E = node_embeddings.shape[1]

    sup_flat = compute_supports(node_embeddings, cheb_k)       # (K*N, N)

    current = x
    output_hidden = []
    for li, p in enumerate(params):
        din = current.shape[-1]
        # One-time parameter layout prep (glue): (E, K, C, O) -> (K, C, E*O),
        # split into x-feature / hidden-state halves so the kernel never
        # concatenates along the lane dim (and can reuse sup@x for both convs).
        gp = jnp.transpose(p["gate_w"], (1, 2, 0, 3)).reshape(
            cheb_k, din + H, E * 2 * H)
        up = jnp.transpose(p["update_w"], (1, 2, 0, 3)).reshape(
            cheb_k, din + H, E * H)
        gpx, gps = gp[:, :din, :], gp[:, din:, :]
        upx, ups = up[:, :din, :], up[:, din:, :]

        current = run_layer(current, init_state[li], sup_flat, node_embeddings,
                            gpx, gps, p["gate_b"], upx, ups, p["update_b"])
        output_hidden.append(current[:, -1])
    return current, output_hidden


def agcrn_forward(seqs, node_embeddings, enc_params, conv_w, conv_b,
                  cheb_k, rnn_units, pred_len, out_dim):
    """Full AGCRN.forward: permute -> encoder -> last step -> end_conv -> reshape."""
    source = jnp.transpose(seqs, (0, 3, 2, 1))                 # (B, T, N, D)
    B, T, N, _ = source.shape
    L = len(enc_params)
    init_state = jnp.zeros((L, B, N, rnn_units), jnp.float32)  # init_hidden()
    enc_out, _ = avwdcrnn_forward(source, init_state, node_embeddings,
                                  enc_params, cheb_k)
    last = enc_out[:, -1]                                      # (B, N, H)
    P = pred_len * out_dim
    w2 = jnp.transpose(conv_w.reshape(P, rnn_units))           # (H, P)
    b2 = conv_b.reshape(1, P)
    y = end_head(last, w2, b2)                                 # (B, N, P)
    y = y.reshape(B, N, pred_len, out_dim)
    y = jnp.transpose(y, (0, 3, 1, 2))                         # (B, out_dim, N, pred_len)
    return y


# ----------------------------------------------------------------------------
# Pure-JAX reference (mirrors the PyTorch code) for verification.
# ----------------------------------------------------------------------------
def _avwgcn_ref(x, E, wpool, bpool, cheb_k):
    N = E.shape[0]
    S = jax.nn.softmax(jax.nn.relu(E @ E.T), axis=1)
    sup = [jnp.eye(N, dtype=jnp.float32), S]
    for _ in range(2, cheb_k):
        sup.append(2.0 * S @ sup[-1] - sup[-2])
    sup = jnp.stack(sup, 0)
    W = jnp.einsum("nd,dkio->nkio", E, wpool)
    b = E @ bpool
    xg = jnp.einsum("knm,bmc->bknc", sup, x)
    xg = jnp.transpose(xg, (0, 2, 1, 3))
    return jnp.einsum("bnki,nkio->bno", xg, W) + b


def _cell_ref(x, state, E, p, cheb_k, H):
    inp = jnp.concatenate([x, state], axis=-1)
    zr = jax.nn.sigmoid(_avwgcn_ref(inp, E, p["gate_w"], p["gate_b"], cheb_k))
    z, r = zr[..., :H], zr[..., H:]
    cand = jnp.concatenate([x, z * state], axis=-1)
    hc = jnp.tanh(_avwgcn_ref(cand, E, p["update_w"], p["update_b"], cheb_k))
    return r * state + (1.0 - r) * hc


def _forward_ref(x, init_state, E, params, cheb_k, H):
    current = x
    outs = []
    for li, p in enumerate(params):
        st = init_state[li]
        states = []
        for t in range(x.shape[1]):
            st = _cell_ref(current[:, t], st, E, p, cheb_k, H)
            states.append(st)
        outs.append(st)
        current = jnp.stack(states, axis=1)
    return current, outs


def _agcrn_ref(seqs, E, enc_params, conv_w, conv_b, cheb_k, H, pred_len, out_dim):
    source = jnp.transpose(seqs, (0, 3, 2, 1))
    B = source.shape[0]
    N = E.shape[0]
    init = jnp.zeros((len(enc_params), B, N, H), jnp.float32)
    out, _ = _forward_ref(source, init, E, enc_params, cheb_k, H)
    last = out[:, -1]                                          # (B, N, H)
    P = pred_len * out_dim
    w2 = conv_w.reshape(P, H)
    y = jnp.einsum("bnh,ph->bpn", last, w2) + conv_b[None, :, None]
    y = y.reshape(B, pred_len, out_dim, N)
    return jnp.transpose(y, (0, 2, 3, 1))                      # (B, out_dim, N, pred_len)


# ----------------------------------------------------------------------------
# Main
# ----------------------------------------------------------------------------
if __name__ == "__main__":
    num_nodes, feature_dim, rnn_units, embed_dim = 16, 4, 32, 8
    num_layers, cheb_k = 2, 3
    B, T, pred_len = 2, 8, 4

    key = jax.random.PRNGKey(0)
    keys = jax.random.split(key, 20)

    seqs = jax.random.normal(keys[0], (B, feature_dim, num_nodes, T), jnp.float32)
    node_embeddings = jax.random.normal(keys[1], (num_nodes, embed_dim), jnp.float32)
    init_state = 0.1 * jax.random.normal(
        keys[2], (num_layers, B, num_nodes, rnn_units), jnp.float32)

    params = []
    kidx = 3
    for li in range(num_layers):
        din = feature_dim if li == 0 else rnn_units
        cin = din + rnn_units
        params.append({
            "gate_w": 0.1 * jax.random.normal(
                keys[kidx + 0], (embed_dim, cheb_k, cin, 2 * rnn_units), jnp.float32),
            "gate_b": 0.1 * jax.random.normal(
                keys[kidx + 1], (embed_dim, 2 * rnn_units), jnp.float32),
            "update_w": 0.1 * jax.random.normal(
                keys[kidx + 2], (embed_dim, cheb_k, cin, rnn_units), jnp.float32),
            "update_b": 0.1 * jax.random.normal(
                keys[kidx + 3], (embed_dim, rnn_units), jnp.float32),
        })
        kidx += 4

    P = pred_len * feature_dim
    conv_w = 0.1 * jax.random.normal(keys[kidx], (P, 1, 1, rnn_units), jnp.float32)
    conv_b = 0.1 * jax.random.normal(keys[kidx + 1], (P,), jnp.float32)

    # --- encoder check (non-zero initial state exercises the t==0 init path) --
    x = jnp.transpose(seqs, (0, 3, 2, 1))                      # (B, T, N, D)
    out, hidden = avwdcrnn_forward(x, init_state, node_embeddings, params, cheb_k)
    out = jax.block_until_ready(out)
    hidden = [jax.block_until_ready(h) for h in hidden]

    out_ref, hidden_ref = _forward_ref(x, init_state, node_embeddings, params,
                                       cheb_k, rnn_units)
    assert out.shape == (B, T, num_nodes, rnn_units)
    assert np.allclose(np.asarray(out), np.asarray(out_ref), atol=5e-3, rtol=5e-3)
    for h, hr in zip(hidden, hidden_ref):
        assert h.shape == (B, num_nodes, rnn_units)
        assert np.allclose(np.asarray(h), np.asarray(hr), atol=5e-3, rtol=5e-3)

    # --- full AGCRN forward (zero init state + end_conv head) -----------------
    y = agcrn_forward(seqs, node_embeddings, params, conv_w, conv_b,
                      cheb_k, rnn_units, pred_len, feature_dim)
    y = jax.block_until_ready(y)
    y_ref = _agcrn_ref(seqs, node_embeddings, params, conv_w, conv_b,
                       cheb_k, rnn_units, pred_len, feature_dim)
    assert y.shape == (B, feature_dim, num_nodes, pred_len)
    assert np.allclose(np.asarray(y), np.asarray(y_ref), atol=5e-3, rtol=5e-3)

    print("KERNEL_OK")
</pallas_src>

<mosaic_0001>
module attributes {stable_mosaic.version = 11 : i64} {
  func.func @supports_kernel(%arg0: memref<16x8xf32, #tpu.memory_space<vmem>>, %arg1: memref<48x16xf32, #tpu.memory_space<vmem>>) attributes {dimension_semantics = [], scalar_prefetch = 0 : i64, scratch_operands = 0 : i64, tpu.core_type = #tpu.core_type<tc>} {
    %c0 = arith.constant 0 : index
    %c0_0 = arith.constant 0 : index
    %0 = vector.load %arg0[%c0, %c0_0] : memref<16x8xf32, #tpu.memory_space<vmem>>, vector<16x8xf32>
    %cst = arith.constant dense<0.000000e+00> : vector<16x16xf32>
    %1 = tpu.matmul %0, %0, %cst {dimension_numbers = #tpu.dot_dimension_numbers<[1], [1], [0], [0], [0, 0, 1, 0], [], []>} : vector<16x8xf32>, vector<16x8xf32>, vector<16x16xf32> -> vector<16x16xf32>
    %cst_1 = arith.constant 0.000000e+00 : f32
    %2 = vector.broadcast %cst_1 : f32 to vector<16x16xf32>
    %3 = arith.maximumf %1, %2 : vector<16x16xf32>
    %cst_2 = arith.constant dense<0xFF800000> : vector<16xf32>
    %4 = vector.multi_reduction <maximumf>, %3, %cst_2 [1] : vector<16x16xf32> to vector<16xf32>
    %5 = vector.shape_cast %4 : vector<16xf32> to vector<16x1xf32>
    %6 = vector.broadcast %5 : vector<16x1xf32> to vector<16x16xf32>
    %7 = arith.subf %3, %6 : vector<16x16xf32>
    %8 = math.exp %7 : vector<16x16xf32>
    %cst_3 = arith.constant dense<0.000000e+00> : vector<16xf32>
    %9 = vector.multi_reduction <add>, %8, %cst_3 [1] : vector<16x16xf32> to vector<16xf32>
    %10 = vector.shape_cast %9 : vector<16xf32> to vector<16x1xf32>
    %11 = vector.broadcast %10 : vector<16x1xf32> to vector<16x16xf32>
    %12 = arith.divf %8, %11 : vector<16x16xf32>
    %13 = tpu.iota {dimensions = array<i32: 0>} : vector<16x16xi32>
    %14 = tpu.iota {dimensions = array<i32: 1>} : vector<16x16xi32>
    %15 = arith.cmpi eq, %13, %14 : vector<16x16xi32>
    %cst_4 = arith.constant 1.000000e+00 : f32
    %cst_5 = arith.constant 0.000000e+00 : f32
    %16 = vector.broadcast %cst_4 : f32 to vector<16x16xf32>
    %17 = vector.broadcast %cst_5 : f32 to vector<16x16xf32>
    %18 = arith.select %15, %16, %17 : vector<16x16xi1>, vector<16x16xf32>
    %cst_6 = arith.constant dense<0.000000e+00> : vector<16x16xf32>
    %19 = tpu.matmul %12, %12, %cst_6 {dimension_numbers = #tpu.dot_dimension_numbers<[1], [0], [0], [1], [0, 0, 1, 1], [], []>} : vector<16x16xf32>, vector<16x16xf32>, vector<16x16xf32> -> vector<16x16xf32>
    %cst_7 = arith.constant 2.000000e+00 : f32
    %20 = vector.broadcast %cst_7 : f32 to vector<16x16xf32>
    %21 = arith.mulf %20, %19 : vector<16x16xf32>
    %22 = arith.subf %21, %18 : vector<16x16xf32>
    %c0_8 = arith.constant 0 : index
    %c0_9 = arith.constant 0 : index
    %23 = vector.load %arg1[%c0_8, %c0_9] : memref<48x16xf32, #tpu.memory_space<vmem>>, vector<16x16xf32>
    tpu.vector_store %arg1[%c0_8, %c0_9], %18 {strides = array<i32>} : memref<48x16xf32, #tpu.memory_space<vmem>>, vector<16x16xf32>,
    %c16 = arith.constant 16 : index
    %c0_10 = arith.constant 0 : index
    %24 = vector.load %arg1[%c16, %c0_10] : memref<48x16xf32, #tpu.memory_space<vmem>>, vector<16x16xf32>
    tpu.vector_store %arg1[%c16, %c0_10], %12 {strides = array<i32>} : memref<48x16xf32, #tpu.memory_space<vmem>>, vector<16x16xf32>,
    %c32 = arith.constant 32 : index
    %c0_11 = arith.constant 0 : index
    %25 = vector.load %arg1[%c32, %c0_11] : memref<48x16xf32, #tpu.memory_space<vmem>>, vector<16x16xf32>
    tpu.vector_store %arg1[%c32, %c0_11], %22 {strides = array<i32>} : memref<48x16xf32, #tpu.memory_space<vmem>>, vector<16x16xf32>,
    return
  }
}

</mosaic_0001>

<llo_original>
// kernel: tpu_custom_call.1
$region0: #{tpu_custom_call.1}
  #allocation0 [shape = 'u32[]', space=smem, size = 0x4, offset = 0x4, fixed_abs, tag = 'smem constant byte address 0x4 - core index']
  #allocation1 [shape = 'u32[144,128]{1,0:T(1,128)}', space=vmem, size = 0x12000, scoped, tag = 'internal scratch']
  %s0 = inlined_call_operand.vmem [shape: f32[16,8], index: 0, kind: input, shape index: {}]
  %s1 = inlined_call_operand.vmem [shape: f32[48,16], index: 1, kind: output, shape index: {}]
  %s2 = sld [smem:[#allocation0]]
  $region14: #{tpu_custom_call.1} parent=0
    _
  %s4 = ssub.s32 1, %s2
  %s5 = scalar_select 0, %s4, %s2
  // Predicated region
  $region2: #{tpu_custom_call.1} parent=0 // pred_check
    _
  $region3: #{tpu_custom_call.1} parent=0 // pred_check_branch
    %7 = sbr.rel (0) target = $region5
  $region4: #{tpu_custom_call.1} parent=0 // pred_region
    _
  $region5: #{tpu_custom_call.1} parent=0 // pred_fallthru
    _
  %v8 = vld [vmem:[%s0] sm:$0xff]
  %v9 = vld [vmem:[%s0 + $0x8] sm:$0xff]
  %vm10 = vcmask 64512
  %v12 = vsel %vm10, %v8, 0
  %v15 = vsel %vm10, %v9, 0
  %17 = vmatprep.subr.mxu0 0.0
  %18 = vmatpush1.xpose.msra.mxu0 0.0
  %19 = vmatprep.subr.mxu0 0.0
  %20 = vmatpush1.xpose.msra.mxu0 0.0
  %21 = vmatprep.subr.mxu0 0.0
  %22 = vmatpush1.xpose.msra.mxu0 0.0
  %23 = vmatprep.subr.mxu0 0.0
  %24 = vmatpush1.xpose.msra.mxu0 0.0
  %25 = vmatprep.subr.mxu0 0.0
  %26 = vmatpush1.xpose.msra.mxu0 0.0
  %27 = vmatprep.subr.mxu0 0.0
  %28 = vmatpush1.xpose.msra.mxu0 0.0
  %29 = vmatprep.subr.mxu0 0.0
  %30 = vmatpush1.xpose.msra.mxu0 0.0
  %31 = vmatprep.subr.mxu0 0.0
  %32 = vmatpush1.xpose.msra.mxu0 0.0
  %33 = vmatprep.subr.mxu0 0.0
  %34 = vmatpush1.xpose.msra.mxu0 0.0
  %35 = vmatprep.subr.mxu0 0.0
  %36 = vmatpush1.xpose.msra.mxu0 0.0
  %37 = vmatprep.subr.mxu0 0.0
  %38 = vmatpush1.xpose.msra.mxu0 0.0
  %39 = vmatprep.subr.mxu0 0.0
  %40 = vmatpush1.xpose.msra.mxu0 0.0
  %41 = vmatprep.subr.mxu0 0.0
  %42 = vmatpush1.xpose.msra.mxu0 0.0
  %43 = vmatprep.subr.mxu0 0.0
  %44 = vmatpush1.xpose.msra.mxu0 0.0
  %45 = vmatprep.subr.mxu0 0.0
  %46 = vmatpush1.xpose.msra.mxu0 %v15
  %47 = vmatprep.subr.mxu0 0.0
  %48 = vmatpush1.xpose.msra.mxu0 %v12
  %49 = vmatprep.subr.mxu0 0.0
  %50 = vmatpush2.xpose.msra.mxu0 0.0
  %51 = vmatprep.subr.mxu0 0.0
  %52 = vmatpush2.xpose.msra.mxu0 0.0
  %53 = vmatprep.subr.mxu0 0.0
  %54 = vmatpush2.xpose.msra.mxu0 0.0
  %55 = vmatprep.subr.mxu0 0.0
  %56 = vmatpush2.xpose.msra.mxu0 0.0
  %57 = vmatprep.subr.mxu0 0.0
  %58 = vmatpush2.xpose.msra.mxu0 0.0
  %59 = vmatprep.subr.mxu0 0.0
  %60 = vmatpush2.xpose.msra.mxu0 0.0
  %61 = vmatprep.subr.mxu0 0.0
  %62 = vmatpush2.xpose.msra.mxu0 0.0
  %63 = vmatprep.subr.mxu0 0.0
  %64 = vmatpush2.xpose.msra.mxu0 0.0
  %65 = vmatprep.subr.mxu0 0.0
  %66 = vmatpush2.xpose.msra.mxu0 0.0
  %67 = vmatprep.subr.mxu0 0.0
  %68 = vmatpush2.xpose.msra.mxu0 0.0
  %69 = vmatprep.subr.mxu0 0.0
  %70 = vmatpush2.xpose.msra.mxu0 0.0
  %71 = vmatprep.subr.mxu0 0.0
  %72 = vmatpush2.xpose.msra.mxu0 0.0
  %73 = vmatprep.subr.mxu0 0.0
  %74 = vmatpush2.xpose.msra.mxu0 0.0
  %75 = vmatprep.subr.mxu0 0.0
  %76 = vmatpush2.xpose.msra.mxu0 0.0
  %77 = vmatprep.subr.mxu0 0.0
  %78 = vmatpush2.xpose.msra.mxu0 0.0
  %79 = vmatprep.subr.mxu0 0.0
  %80 = vmatpush2.xpose.msra.mxu0 0.0
  %81 = vmatprep.mubr.f32.mxu0 0.0
  %82 = vmatmul.mubr.f32.gmra.mxu0 %v12
  %v83 = vpop.f32.mrf.mxu0
  %v84 = vadd.f32 0.0, %v83
  %v85 = vpop.f32.mrf.mxu0
  %86 = vmatprep.mubr.f32.mxu0 0.0
  %87 = vmatmul.mubr.f32.gmra.mxu0 %v15
  %v88 = vpop.f32.mrf.mxu0
  %v89 = vadd.f32 0.0, %v88
  %v90 = vpop.f32.mrf.mxu0
  %91 = vdwg.mxu0
  %v92 = vmax.f32 %v84, 0.0
  %v93 = vmax.f32 %v89, 0.0
  %vm94 = vcmask 130048
  %v95 = vsel %vm94, %v92, -inf
  %96 = vmax.xlane.f32.xlu0 %v95
  %v97 = vpop.xlane.xlu0 %96
  %v98 = vsel %vm94, %v93, -inf
  %99 = vmax.xlane.f32.xlu0 %v98
  %v100 = vpop.xlane.xlu0 %99
  %v101 = vsub.f32 %v92, %v97
  %v102 = vsub.f32 %v93, %v100
  %v103 = vmul.f32 %v101, 1.442695
  %v104 = vpow.pop %v103
  %v105 = vmul.f32 %v102, 1.442695
  %v106 = vpow.pop %v105
  %v107 = vsel %vm94, %v104, 0.0
  %108 = vadd.xlane.f32.xlu0 %v107
  %v109 = vpop.xlane.xlu0 %108
  %v110 = vsel %vm94, %v106, 0.0
  %111 = vadd.xlane.f32.xlu0 %v110
  %v112 = vpop.xlane.xlu0 %111
  %v113 = vrcp.pop %v109
  %v114 = vmul.f32 %v104, %v113
  %v115 = vrcp.pop %v112
  %v116 = vmul.f32 %v106, %v115
  %v117 = vlaneseq
  %v118 = vshrl.u32 %v117, 7
  %v119 = vadd.s32 %v118, 8
  %v120 = vlaneseq
  %v121 = vand.u32 %v120, 127
  %vm122 = vcmp.eq.s32.totalorder %v118, %v121
  %vm123 = vcmp.eq.s32.totalorder %v119, %v121
  %v124 = vsel %vm122, 1.0, 0.0
  %v125 = vsel %vm123, 1.0, 0.0
  %v127 = vsel %vm94, %v114, 0
  %v130 = vsel %vm94, %v116, 0
  %132 = vmatprep.subr.mxu0 0.0
  %133 = vmatpush1.msra.mxu0 0.0
  %134 = vmatprep.subr.mxu0 0.0
  %135 = vmatpush1.msra.mxu0 0.0
  %136 = vmatprep.subr.mxu0 0.0
  %137 = vmatpush1.msra.mxu0 0.0
  %138 = vmatprep.subr.mxu0 0.0
  %139 = vmatpush1.msra.mxu0 0.0
  %140 = vmatprep.subr.mxu0 0.0
  %141 = vmatpush1.msra.mxu0 0.0
  %142 = vmatprep.subr.mxu0 0.0
  %143 = vmatpush1.msra.mxu0 0.0
  %144 = vmatprep.subr.mxu0 0.0
  %145 = vmatpush1.msra.mxu0 0.0
  %146 = vmatprep.subr.mxu0 0.0
  %147 = vmatpush1.msra.mxu0 0.0
  %148 = vmatprep.subr.mxu0 0.0
  %149 = vmatpush1.msra.mxu0 0.0
  %150 = vmatprep.subr.mxu0 0.0
  %151 = vmatpush1.msra.mxu0 0.0
  %152 = vmatprep.subr.mxu0 0.0
  %153 = vmatpush1.msra.mxu0 0.0
  %154 = vmatprep.subr.mxu0 0.0
  %155 = vmatpush1.msra.mxu0 0.0
  %156 = vmatprep.subr.mxu0 0.0
  %157 = vmatpush1.msra.mxu0 0.0
  %158 = vmatprep.subr.mxu0 0.0
  %159 = vmatpush1.msra.mxu0 0.0
  %160 = vmatprep.subr.mxu0 0.0
  %161 = vmatpush1.msra.mxu0 %v116
  %162 = vmatprep.subr.mxu0 0.0
  %163 = vmatpush1.msra.mxu0 %v114
  %164 = vmatprep.subr.mxu0 0.0
  %165 = vmatpush2.msra.mxu0 0.0
  %166 = vmatprep.subr.mxu0 0.0
  %167 = vmatpush2.msra.mxu0 0.0
  %168 = vmatprep.subr.mxu0 0.0
  %169 = vmatpush2.msra.mxu0 0.0
  %170 = vmatprep.subr.mxu0 0.0
  %171 = vmatpush2.msra.mxu0 0.0
  %172 = vmatprep.subr.mxu0 0.0
  %173 = vmatpush2.msra.mxu0 0.0
  %174 = vmatprep.subr.mxu0 0.0
  %175 = vmatpush2.msra.mxu0 0.0
  %176 = vmatprep.subr.mxu0 0.0
  %177 = vmatpush2.msra.mxu0 0.0
  %178 = vmatprep.subr.mxu0 0.0
  %179 = vmatpush2.msra.mxu0 0.0
  %180 = vmatprep.subr.mxu0 0.0
  %181 = vmatpush2.msra.mxu0 0.0
  %182 = vmatprep.subr.mxu0 0.0
  %183 = vmatpush2.msra.mxu0 0.0
  %184 = vmatprep.subr.mxu0 0.0
  %185 = vmatpush2.msra.mxu0 0.0
  %186 = vmatprep.subr.mxu0 0.0
  %187 = vmatpush2.msra.mxu0 0.0
  %188 = vmatprep.subr.mxu0 0.0
  %189 = vmatpush2.msra.mxu0 0.0
  %190 = vmatprep.subr.mxu0 0.0
  %191 = vmatpush2.msra.mxu0 0.0
  %192 = vmatprep.subr.mxu0 0.0
  %193 = vmatpush2.msra.mxu0 0.0
  %194 = vmatprep.subr.mxu0 0.0
  %195 = vmatpush2.msra.mxu0 0.0
  %196 = vmatprep.mubr.f32.mxu0 0.0
  %197 = vmatmul.mubr.f32.gmra.mxu0 %v127
  %v198 = vpop.f32.mrf.mxu0
  %v199 = vadd.f32 0.0, %v198
  %v200 = vpop.f32.mrf.mxu0
  %201 = vmatprep.mubr.f32.mxu0 0.0
  %202 = vmatmul.mubr.f32.gmra.mxu0 %v130
  %v203 = vpop.f32.mrf.mxu0
  %v204 = vadd.f32 0.0, %v203
  %v205 = vpop.f32.mrf.mxu0
  %206 = vdwg.mxu0
  %v207 = vmul.f32 %v199, 2.0
  %v208 = vmul.f32 %v204, 2.0
  %v209 = vsub.f32 %v207, %v124
  %v210 = vsub.f32 %v208, %v125
  %211 = vst.msk [vmem:[%s1] sm:$0xff] %vm94, %v124
  %212 = vst.msk [vmem:[%s1 + $0x8] sm:$0xff] %vm94, %v125
  %213 = vst.msk [vmem:[%s1 + $0x10] sm:$0xff] %vm94, %v114
  %214 = vst.msk [vmem:[%s1 + $0x18] sm:$0xff] %vm94, %v116
  %215 = vst.msk [vmem:[%s1 + $0x20] sm:$0xff] %vm94, %v209
  %216 = vst.msk [vmem:[%s1 + $0x28] sm:$0xff] %vm94, %v210
  // Predicated region
  $region6: #{tpu_custom_call.1} parent=0 // pred_check
    _
  $region7: #{tpu_custom_call.1} parent=0 // pred_check_branch
    %218 = sbr.rel (0) target = $region9
  $region8: #{tpu_custom_call.1} parent=0 // pred_region
    _
  $region9: #{tpu_custom_call.1} parent=0 // pred_fallthru
    _
  // Predicated region
  $region10: #{tpu_custom_call.1} parent=0 // pred_check
    _
  $region11: #{tpu_custom_call.1} parent=0 // pred_check_branch
    %220 = sbr.rel (0) target = $region13
  $region12: #{tpu_custom_call.1} parent=0 // pred_region
    _
  $region13: #{tpu_custom_call.1} parent=0 // pred_fallthru
    _

</llo_original>
